<compile_context>
chip_gen: v5e
topology: v5e:2x2
jax: 0.10.0
libtpu: 0.0.40
codegen_flags: <defaults>
</compile_context>

<pallas_src>
import functools

import jax
import jax.numpy as jnp
from jax.experimental import pallas as pl
from jax.experimental.pallas import tpu as pltpu

# SELU constants (torch.nn.SELU defaults)
_SELU_ALPHA = 1.6732632423543772
_SELU_SCALE = 1.0507009873554805

_N_IN = 9        # board features
_HID1 = 128      # Linear(9, 128)
_HID2 = 64       # Linear(128, 64)
_HID2_PAD = 128  # h2 padded to full lane width
_HEAD = 128      # fused head matmul lane width (only lanes 0..9 are used)
_N_ACT = 9       # policy logits occupy cols [0, 9)
_VAL_COL = 9     # value occupies col 9

_DEFAULT_COMPUTE_DTYPE = jnp.bfloat16


def _round_up(n, m):
    return ((n + m - 1) // m) * m


def _selu(x):
    # exp only on the non-positive branch; discarded branch can never be inf.
    return _SELU_SCALE * jnp.where(
        x > 0, x, _SELU_ALPHA * (jnp.exp(jnp.minimum(x, 0.0)) - 1.0))


def pvnet_kernel(x_ref, w1_ref, b1_ref, w2_ref, b2_ref, wh_ref, bh_ref,
                 pol_ref, val_ref):
    # Cast input to the matmul dtype in-kernel (no extra XLA op in the wrapper).
    x = x_ref[...].astype(w1_ref.dtype)                                  # (tb, 9)

    # Linear(9, 128) + SELU (bias add + activation in f32)
    h1 = jnp.dot(x, w1_ref[...], preferred_element_type=jnp.float32) + b1_ref[...]
    h1 = _selu(h1).astype(w2_ref.dtype)                                  # (tb, 128)

    # Linear(128, 64) zero-padded to 128 output lanes + SELU
    # (padded cols are exactly 0: 0-weight, 0-bias, SELU(0) == 0)
    h2 = jnp.dot(h1, w2_ref[...], preferred_element_type=jnp.float32) + b2_ref[...]
    h2 = _selu(h2).astype(wh_ref.dtype)                                  # (tb, 128)

    # Fused heads: ONE 128-wide MXU pass; lanes 0..8 = policy, lane 9 = value.
    head = jnp.dot(h2, wh_ref[...], preferred_element_type=jnp.float32) + bh_ref[...]

    # Narrow stores: total writeback is ~40 B/row instead of a 512 B/row slab,
    # and no post-kernel slices are needed.
    pol_ref[...] = head[:, :_N_ACT].astype(pol_ref.dtype)                # (tb, 9)
    val_ref[...] = jnp.tanh(head[:, _VAL_COL:_VAL_COL + 1]).astype(val_ref.dtype)


def pack_params(params, compute_dtype=_DEFAULT_COMPUTE_DTYPE):
    """Pad/fuse/cast the weights ONCE at parameter-load time.

    Returns (w1, b1, w2_padded, b2_padded, w_head, b_head). Call this outside
    the per-step forward so the ~8 small repack kernels never hit the MCTS
    latency path.
    """
    w1, b1, w2, b2, wp, bp, wv, bv = params

    w2p = jnp.zeros((_HID1, _HID2_PAD), jnp.float32).at[:, :_HID2].set(w2)
    b2p = jnp.zeros((1, _HID2_PAD), jnp.float32).at[:, :_HID2].set(
        jnp.reshape(b2, (1, _HID2)))

    wh = jnp.zeros((_HID2_PAD, _HEAD), jnp.float32)
    wh = wh.at[:_HID2, :_N_ACT].set(wp)
    wh = wh.at[:_HID2, _VAL_COL:_VAL_COL + 1].set(jnp.reshape(wv, (_HID2, 1)))

    bh = jnp.zeros((1, _HEAD), jnp.float32)
    bh = bh.at[:, :_N_ACT].set(jnp.reshape(bp, (1, _N_ACT)))
    bh = bh.at[:, _VAL_COL:_VAL_COL + 1].set(jnp.reshape(bv, (1, 1)))

    # Weights in compute dtype (bf16 default); biases stay f32 (added post-MXU).
    return (w1.astype(compute_dtype),
            jnp.reshape(b1, (1, _HID1)).astype(jnp.float32),
            w2p.astype(compute_dtype), b2p,
            wh.astype(compute_dtype), bh)


def _choose_tile(batch, block_b):
    """Pick (tile, padded_batch).  Auto mode targets ~8 pipelined grid steps
    (>=4 per TensorCore on v7x) with tiles in [256, 2048] rows."""
    b8 = _round_up(max(batch, 1), 8)            # f32 sublane alignment
    if block_b is not None:
        tile = _round_up(min(block_b, b8), 8)
    else:
        tile = _round_up(-(-b8 // 8), 8)        # ~batch/8 rows per step
        tile = max(256, min(tile, 2048))
        tile = min(tile, b8)
    padded = _round_up(b8, tile)
    return tile, padded


@functools.partial(jax.jit, static_argnames=("block_b",))
def policy_value_forward(x, packed_params, *, block_b=None):
    """Forward pass on pre-packed params: returns (policy_logits (B,9), value (B,1))."""
    B = x.shape[0]
    w1, b1, w2p, b2p, wh, bh = packed_params

    tile, Bp = _choose_tile(B, block_b)
    if Bp != B:
        x = jnp.pad(x, ((0, Bp - B), (0, 0)))
    grid = (Bp // tile,)

    def row_spec(cols):
        return pl.BlockSpec((tile, cols), lambda i: (i, 0))

    def weight_spec(a):
        # Constant index_map: weights stay resident in VMEM across grid steps.
        return pl.BlockSpec(a.shape, lambda i: (0,) * a.ndim)

    # VMEM budget: double-buffered input + both outputs (lane-padded) plus
    # f32 intermediates.  Capped at 64 MiB so big tiles cannot OOM v7x.
    lane = 128
    in_bytes = jnp.dtype(x.dtype).itemsize
    step_bytes = tile * lane * (2 * in_bytes      # x, double-buffered
                                + 2 * 4 + 2 * 4   # policy + value, double-buffered
                                + 3 * 4)          # h1 / h2 / head f32 temporaries
    weight_bytes = 3 * lane * lane * 4 + 3 * lane * 4
    vmem_limit = int(min(max(2 * (step_bytes + weight_bytes), 32 << 20), 64 << 20))

    pol, val = pl.pallas_call(
        pvnet_kernel,
        out_shape=(jax.ShapeDtypeStruct((Bp, _N_ACT), jnp.float32),
                   jax.ShapeDtypeStruct((Bp, 1), jnp.float32)),
        grid=grid,
        in_specs=[row_spec(_N_IN),
                  weight_spec(w1), weight_spec(b1),
                  weight_spec(w2p), weight_spec(b2p),
                  weight_spec(wh), weight_spec(bh)],
        out_specs=[row_spec(_N_ACT), row_spec(1)],
        compiler_params=pltpu.CompilerParams(
            dimension_semantics=("parallel",),    # megacore sharding on v7x
            vmem_limit_bytes=vmem_limit),
    )(x, w1, b1, w2p, b2p, wh, bh)

    # Batch-pad trim only (no-op when Bp == B); no lane slices remain.
    return pol[:B], val[:B]


def policy_value_net(x, params, *, block_b=None,
                     compute_dtype=_DEFAULT_COMPUTE_DTYPE):
    """Convenience wrapper (packs params every call -- NOT for the hot loop)."""
    return policy_value_forward(x, pack_params(params, compute_dtype),
                                block_b=block_b)


def init_params(key):
    """Deterministic synthetic parameters; shapes match the torch module."""
    ks = jax.random.split(key, 8)
    scale = 0.1
    w1 = scale * jax.random.normal(ks[0], (_N_IN, _HID1), jnp.float32)   # Linear(9, 128)
    b1 = scale * jax.random.normal(ks[1], (1, _HID1), jnp.float32)
    w2 = scale * jax.random.normal(ks[2], (_HID1, _HID2), jnp.float32)   # Linear(128, 64)
    b2 = scale * jax.random.normal(ks[3], (1, _HID2), jnp.float32)
    wp = scale * jax.random.normal(ks[4], (_HID2, _N_ACT), jnp.float32)  # policy head
    bp = scale * jax.random.normal(ks[5], (1, _N_ACT), jnp.float32)
    wv = scale * jax.random.normal(ks[6], (_HID2, 1), jnp.float32)       # value head
    bv = scale * jax.random.normal(ks[7], (1, 1), jnp.float32)
    return (w1, b1, w2, b2, wp, bp, wv, bv)


def reference_forward(x, params):
    """Plain-JAX reference matching the torch forward semantics."""
    w1, b1, w2, b2, wp, bp, wv, bv = params
    h = _selu(x @ w1 + b1)
    h = _selu(h @ w2 + b2)
    policy_logits = h @ wp + bp
    value = jnp.tanh(h @ wv + bv)
    return policy_logits, value


if __name__ == "__main__":
    key = jax.random.PRNGKey(0)
    k_x1, k_x2, k_p = jax.random.split(key, 3)
    params = init_params(k_p)

    # Pack once (load time), both precisions.
    packed_bf16 = pack_params(params)                 # default: bf16 matmuls
    packed_f32 = pack_params(params, jnp.float32)     # exact-math path

    # --- tiny batch (MCTS single-leaf style) ---
    batch = 2
    x_small = jax.random.normal(k_x1, (batch, _N_IN), jnp.float32)
    ref_pol_s, ref_val_s = reference_forward(x_small, params)

    pol, val = policy_value_forward(x_small, packed_f32)
    jax.block_until_ready((pol, val))
    assert pol.shape == (batch, _N_ACT)
    assert val.shape == (batch, 1)
    assert jnp.allclose(pol, ref_pol_s, atol=1e-5, rtol=1e-5)
    assert jnp.allclose(val, ref_val_s, atol=1e-5, rtol=1e-5)

    pol_bf, val_bf = policy_value_forward(x_small, packed_bf16)
    jax.block_until_ready((pol_bf, val_bf))
    assert jnp.allclose(pol_bf, ref_pol_s, atol=5e-2, rtol=5e-2)
    assert jnp.allclose(val_bf, ref_val_s, atol=5e-2, rtol=5e-2)

    # --- batched leaves: auto tile (grid=2 with batch padding), f32 exact ---
    big_batch = 260
    x_big = jax.random.normal(k_x2, (big_batch, _N_IN), jnp.float32)
    ref_pol_b, ref_val_b = reference_forward(x_big, params)

    pol_b, val_b = policy_value_forward(x_big, packed_f32)
    jax.block_until_ready((pol_b, val_b))
    assert pol_b.shape == (big_batch, _N_ACT)
    assert val_b.shape == (big_batch, 1)
    assert jnp.allclose(pol_b, ref_pol_b, atol=1e-5, rtol=1e-5)
    assert jnp.allclose(val_b, ref_val_b, atol=1e-5, rtol=1e-5)

    # --- forced small tile exercises multi-step grid on the bf16 fast path ---
    pol_b2, val_b2 = policy_value_forward(x_big, packed_bf16, block_b=128)
    jax.block_until_ready((pol_b2, val_b2))
    assert jnp.allclose(pol_b2, ref_pol_b, atol=5e-2, rtol=5e-2)
    assert jnp.allclose(val_b2, ref_val_b, atol=5e-2, rtol=5e-2)

    print("KERNEL_OK")
</pallas_src>

<mosaic_0001>
module attributes {stable_mosaic.version = 11 : i64} {
  func.func @pvnet_kernel(%arg0: i32, %arg1: memref<8x9xf32, #tpu.memory_space<vmem>>, %arg2: memref<9x128xf32, #tpu.memory_space<vmem>>, %arg3: memref<1x128xf32, #tpu.memory_space<vmem>>, %arg4: memref<128x128xf32, #tpu.memory_space<vmem>>, %arg5: memref<1x128xf32, #tpu.memory_space<vmem>>, %arg6: memref<128x128xf32, #tpu.memory_space<vmem>>, %arg7: memref<1x128xf32, #tpu.memory_space<vmem>>, %arg8: memref<8x9xf32, #tpu.memory_space<vmem>>, %arg9: memref<8x1xf32, #tpu.memory_space<vmem>>) attributes {dimension_semantics = [#tpu.dimension_semantics<parallel>], iteration_bounds = array<i64: 1>, scalar_prefetch = 0 : i64, scratch_operands = 0 : i64, tpu.core_type = #tpu.core_type<tc>, window_params = [{transform_indices = @transform_0, window_bounds = array<i64: 8, 9>}, {pipeline_mode = #tpu.pipeline_mode<synchronous>, transform_indices = @transform_1, window_bounds = array<i64: 9, 128>}, {pipeline_mode = #tpu.pipeline_mode<synchronous>, transform_indices = @transform_2, window_bounds = array<i64: 1, 128>}, {pipeline_mode = #tpu.pipeline_mode<synchronous>, transform_indices = @transform_3, window_bounds = array<i64: 128, 128>}, {pipeline_mode = #tpu.pipeline_mode<synchronous>, transform_indices = @transform_4, window_bounds = array<i64: 1, 128>}, {pipeline_mode = #tpu.pipeline_mode<synchronous>, transform_indices = @transform_5, window_bounds = array<i64: 128, 128>}, {pipeline_mode = #tpu.pipeline_mode<synchronous>, transform_indices = @transform_6, window_bounds = array<i64: 1, 128>}, {transform_indices = @transform_7, window_bounds = array<i64: 8, 9>}, {transform_indices = @transform_8, window_bounds = array<i64: 8, 1>}]} {
    %c0 = arith.constant 0 : index
    %c0_0 = arith.constant 0 : index
    %0 = vector.load %arg1[%c0, %c0_0] : memref<8x9xf32, #tpu.memory_space<vmem>>, vector<8x9xf32>
    %c0_1 = arith.constant 0 : index
    %c0_2 = arith.constant 0 : index
    %1 = vector.load %arg2[%c0_1, %c0_2] : memref<9x128xf32, #tpu.memory_space<vmem>>, vector<9x128xf32>
    %cst = arith.constant dense<0.000000e+00> : vector<8x128xf32>
    %2 = tpu.matmul %0, %1, %cst {dimension_numbers = #tpu.dot_dimension_numbers<[1], [0], [0], [1], [0, 0, 1, 1], [], []>} : vector<8x9xf32>, vector<9x128xf32>, vector<8x128xf32> -> vector<8x128xf32>
    %c0_3 = arith.constant 0 : index
    %c0_4 = arith.constant 0 : index
    %3 = vector.load %arg3[%c0_3, %c0_4] : memref<1x128xf32, #tpu.memory_space<vmem>>, vector<1x128xf32>
    %4 = vector.broadcast %3 : vector<1x128xf32> to vector<8x128xf32>
    %5 = arith.addf %2, %4 : vector<8x128xf32>
    %cst_5 = arith.constant 0.000000e+00 : f32
    %6 = vector.broadcast %cst_5 : f32 to vector<8x128xf32>
    %7 = arith.cmpf ogt, %5, %6 : vector<8x128xf32>
    %cst_6 = arith.constant 0.000000e+00 : f32
    %8 = vector.broadcast %cst_6 : f32 to vector<8x128xf32>
    %9 = arith.minimumf %5, %8 : vector<8x128xf32>
    %10 = math.exp %9 : vector<8x128xf32>
    %cst_7 = arith.constant 1.000000e+00 : f32
    %11 = vector.broadcast %cst_7 : f32 to vector<8x128xf32>
    %12 = arith.subf %10, %11 : vector<8x128xf32>
    %cst_8 = arith.constant 1.67326319 : f32
    %13 = vector.broadcast %cst_8 : f32 to vector<8x128xf32>
    %14 = arith.mulf %13, %12 : vector<8x128xf32>
    %15 = arith.select %7, %5, %14 : vector<8x128xi1>, vector<8x128xf32>
    %cst_9 = arith.constant 1.05070102 : f32
    %16 = vector.broadcast %cst_9 : f32 to vector<8x128xf32>
    %17 = arith.mulf %16, %15 : vector<8x128xf32>
    %c0_10 = arith.constant 0 : index
    %c0_11 = arith.constant 0 : index
    %18 = vector.load %arg4[%c0_10, %c0_11] : memref<128x128xf32, #tpu.memory_space<vmem>>, vector<128x128xf32>
    %cst_12 = arith.constant dense<0.000000e+00> : vector<8x128xf32>
    %19 = tpu.matmul %17, %18, %cst_12 {dimension_numbers = #tpu.dot_dimension_numbers<[1], [0], [0], [1], [0, 0, 1, 1], [], []>} : vector<8x128xf32>, vector<128x128xf32>, vector<8x128xf32> -> vector<8x128xf32>
    %c0_13 = arith.constant 0 : index
    %c0_14 = arith.constant 0 : index
    %20 = vector.load %arg5[%c0_13, %c0_14] : memref<1x128xf32, #tpu.memory_space<vmem>>, vector<1x128xf32>
    %21 = vector.broadcast %20 : vector<1x128xf32> to vector<8x128xf32>
    %22 = arith.addf %19, %21 : vector<8x128xf32>
    %cst_15 = arith.constant 0.000000e+00 : f32
    %23 = vector.broadcast %cst_15 : f32 to vector<8x128xf32>
    %24 = arith.cmpf ogt, %22, %23 : vector<8x128xf32>
    %cst_16 = arith.constant 0.000000e+00 : f32
    %25 = vector.broadcast %cst_16 : f32 to vector<8x128xf32>
    %26 = arith.minimumf %22, %25 : vector<8x128xf32>
    %27 = math.exp %26 : vector<8x128xf32>
    %cst_17 = arith.constant 1.000000e+00 : f32
    %28 = vector.broadcast %cst_17 : f32 to vector<8x128xf32>
    %29 = arith.subf %27, %28 : vector<8x128xf32>
    %cst_18 = arith.constant 1.67326319 : f32
    %30 = vector.broadcast %cst_18 : f32 to vector<8x128xf32>
    %31 = arith.mulf %30, %29 : vector<8x128xf32>
    %32 = arith.select %24, %22, %31 : vector<8x128xi1>, vector<8x128xf32>
    %cst_19 = arith.constant 1.05070102 : f32
    %33 = vector.broadcast %cst_19 : f32 to vector<8x128xf32>
    %34 = arith.mulf %33, %32 : vector<8x128xf32>
    %c0_20 = arith.constant 0 : index
    %c0_21 = arith.constant 0 : index
    %35 = vector.load %arg6[%c0_20, %c0_21] : memref<128x128xf32, #tpu.memory_space<vmem>>, vector<128x128xf32>
    %cst_22 = arith.constant dense<0.000000e+00> : vector<8x128xf32>
    %36 = tpu.matmul %34, %35, %cst_22 {dimension_numbers = #tpu.dot_dimension_numbers<[1], [0], [0], [1], [0, 0, 1, 1], [], []>} : vector<8x128xf32>, vector<128x128xf32>, vector<8x128xf32> -> vector<8x128xf32>
    %c0_23 = arith.constant 0 : index
    %c0_24 = arith.constant 0 : index
    %37 = vector.load %arg7[%c0_23, %c0_24] : memref<1x128xf32, #tpu.memory_space<vmem>>, vector<1x128xf32>
    %38 = vector.broadcast %37 : vector<1x128xf32> to vector<8x128xf32>
    %39 = arith.addf %36, %38 : vector<8x128xf32>
    %40 = vector.extract_strided_slice %39 {offsets = [0, 0], sizes = [8, 9], strides = [1, 1]} : vector<8x128xf32> to vector<8x9xf32>
    %c0_25 = arith.constant 0 : index
    %c0_26 = arith.constant 0 : index
    %41 = vector.load %arg8[%c0_25, %c0_26] : memref<8x9xf32, #tpu.memory_space<vmem>>, vector<8x9xf32>
    tpu.vector_store %arg8[%c0_25, %c0_26], %40 {strides = array<i32>} : memref<8x9xf32, #tpu.memory_space<vmem>>, vector<8x9xf32>,
    %42 = vector.extract_strided_slice %39 {offsets = [0, 9], sizes = [8, 1], strides = [1, 1]} : vector<8x128xf32> to vector<8x1xf32>
    %43 = math.tanh %42 : vector<8x1xf32>
    %c0_27 = arith.constant 0 : index
    %c0_28 = arith.constant 0 : index
    %44 = vector.load %arg9[%c0_27, %c0_28] : memref<8x1xf32, #tpu.memory_space<vmem>>, vector<8x1xf32>
    tpu.vector_store %arg9[%c0_27, %c0_28], %43 {strides = array<i32>} : memref<8x1xf32, #tpu.memory_space<vmem>>, vector<8x1xf32>,
    return
  }
  func.func @transform_0(%arg0: i32) -> (i32, i32) {
    %c0_i32 = arith.constant 0 : i32
    %c0_i32_0 = arith.constant 0 : i32
    return %arg0, %c0_i32 : i32, i32
  }
  func.func @transform_1(%arg0: i32) -> (i32, i32) {
    %c0_i32 = arith.constant 0 : i32
    %c0_i32_0 = arith.constant 0 : i32
    %c0_i32_1 = arith.constant 0 : i32
    return %c0_i32, %c0_i32_0 : i32, i32
  }
  func.func @transform_2(%arg0: i32) -> (i32, i32) {
    %c0_i32 = arith.constant 0 : i32
    %c0_i32_0 = arith.constant 0 : i32
    %c0_i32_1 = arith.constant 0 : i32
    return %c0_i32, %c0_i32_0 : i32, i32
  }
  func.func @transform_3(%arg0: i32) -> (i32, i32) {
    %c0_i32 = arith.constant 0 : i32
    %c0_i32_0 = arith.constant 0 : i32
    %c0_i32_1 = arith.constant 0 : i32
    return %c0_i32, %c0_i32_0 : i32, i32
  }
  func.func @transform_4(%arg0: i32) -> (i32, i32) {
    %c0_i32 = arith.constant 0 : i32
    %c0_i32_0 = arith.constant 0 : i32
    %c0_i32_1 = arith.constant 0 : i32
    return %c0_i32, %c0_i32_0 : i32, i32
  }
  func.func @transform_5(%arg0: i32) -> (i32, i32) {
    %c0_i32 = arith.constant 0 : i32
    %c0_i32_0 = arith.constant 0 : i32
    %c0_i32_1 = arith.constant 0 : i32
    return %c0_i32, %c0_i32_0 : i32, i32
  }
  func.func @transform_6(%arg0: i32) -> (i32, i32) {
    %c0_i32 = arith.constant 0 : i32
    %c0_i32_0 = arith.constant 0 : i32
    %c0_i32_1 = arith.constant 0 : i32
    return %c0_i32, %c0_i32_0 : i32, i32
  }
  func.func @transform_7(%arg0: i32) -> (i32, i32) {
    %c0_i32 = arith.constant 0 : i32
    %c0_i32_0 = arith.constant 0 : i32
    return %arg0, %c0_i32 : i32, i32
  }
  func.func @transform_8(%arg0: i32) -> (i32, i32) {
    %c0_i32 = arith.constant 0 : i32
    %c0_i32_0 = arith.constant 0 : i32
    return %arg0, %c0_i32 : i32, i32
  }
}

</mosaic_0001>

<llo_original>
// kernel: policy_value_forward.1
$region0: #{policy_value_forward.1}
  #allocation0 [shape = 'u32[]', space=smem, size = 0x4, offset = 0x4, fixed_abs, tag = 'smem constant byte address 0x4 - core index']
  #allocation1 [shape = 'u32[72,128]{1,0:T(1,128)}', space=vmem, size = 0x9000, scoped, tag = 'internal scratch']
  %s0 = inlined_call_operand.vmem [shape: f32[8,9], index: 0, kind: input, shape index: {}]
  %s1 = inlined_call_operand.hbm [shape: f32[9,128], index: 1, kind: input, shape index: {}]
  %s2 = inlined_call_operand.vmem [shape: f32[1,128], index: 2, kind: input, shape index: {}]
  %s3 = inlined_call_operand.hbm [shape: f32[128,128], index: 3, kind: input, shape index: {}]
  %s4 = inlined_call_operand.vmem [shape: f32[1,128], index: 4, kind: input, shape index: {}]
  %s5 = inlined_call_operand.hbm [shape: f32[128,128], index: 5, kind: input, shape index: {}]
  %s6 = inlined_call_operand.vmem [shape: f32[1,128], index: 6, kind: input, shape index: {}]
  %s7 = inlined_call_operand.vmem [shape: f32[8,9], index: 7, kind: output, shape index: {0}]
  %s8 = inlined_call_operand.vmem [shape: f32[8,1], index: 8, kind: output, shape index: {1}]
  %9 = xla_tuple %s7, %s8
  %s10 = sld [smem:[#allocation0]]
  $region58: #{policy_value_forward.1} parent=0
    _
  %s12 = ssub.s32 1, %s10
  %s13 = scalar_select 0, %s12, %s10
  $region1: #{policy_value_forward.1} parent=0
    #allocation2 [shape = 'u8[8192]{0}', space=vmem, size = 0x2000, scoped, tag = 'input window, operand 1, single buffered']
    #allocation3 [shape = 's32[1]{0}', space=sflag, size = 0x4, scoped, tag = 'scoped memory for policy_value_forward.1']
    #allocation4 [shape = 'u8[65536]{0}', space=vmem, size = 0x10000, scoped, tag = 'input window, operand 3, single buffered']
    #allocation5 [shape = 's32[1]{0}', space=sflag, size = 0x4, scoped, tag = 'scoped memory for policy_value_forward.1']
    #allocation6 [shape = 'u8[65536]{0}', space=vmem, size = 0x10000, scoped, tag = 'input window, operand 5, single buffered']
    %14 = vsyncpa [#allocation3], 0
    %15 = vsyncpa [#allocation5], 0
    // Predicated region
    $region2: #{policy_value_forward.1} parent=1 // pred_check
      _
    $region3: #{policy_value_forward.1} parent=1 // pred_check_branch
      %17 = sbr.rel (0) target = $region5
    $region4: #{policy_value_forward.1} parent=1 // pred_region
      _
    $region5: #{policy_value_forward.1} parent=1 // pred_fallthru
      _
    // Predicated region
    $region6: #{policy_value_forward.1} parent=1 // pred_check
      _
    $region7: #{policy_value_forward.1} parent=1 // pred_check_branch
      %19 = sbr.rel (0) target = $region9
    $region8: #{policy_value_forward.1} parent=1 // pred_region
      %21 = vsyncadd [#allocation3], 0
      %s22 = sshll.u32 %s1, 4
      %s23 = int_to_ptr.hbm [resolvable:$true] %s22
      %s24 = sshll.u32 [#allocation2], 4
      %s25 = int_to_ptr.vmem [resolvable:$true] %s24
      %30 = dma.hbm_to_vmem [thread:$0]  %s23, 256, %s25, [#allocation3], 128, 128, 8
    $region9: #{policy_value_forward.1} parent=1 // pred_fallthru
      _
    // Predicated region
    $region10: #{policy_value_forward.1} parent=1 // pred_check
      _
    $region11: #{policy_value_forward.1} parent=1 // pred_check_branch
      %32 = sbr.rel (0) target = $region13
    $region12: #{policy_value_forward.1} parent=1 // pred_region
      _
    $region13: #{policy_value_forward.1} parent=1 // pred_fallthru
      _
    // Predicated region
    $region14: #{policy_value_forward.1} parent=1 // pred_check
      _
    $region15: #{policy_value_forward.1} parent=1 // pred_check_branch
      %34 = sbr.rel (0) target = $region17
    $region16: #{policy_value_forward.1} parent=1 // pred_region
      %36 = vsyncadd [#allocation5], 0
      %s37 = sshll.u32 %s3, 4
      %s38 = int_to_ptr.hbm [resolvable:$true] %s37
      %s39 = sshll.u32 [#allocation4], 4
      %s40 = int_to_ptr.vmem [resolvable:$true] %s39
      %45 = dma.hbm_to_vmem [thread:$0]  %s38, 2048, %s40, [#allocation5], 128, 128, 8
    $region17: #{policy_value_forward.1} parent=1 // pred_fallthru
      _
    // Predicated region
    $region18: #{policy_value_forward.1} parent=1 // pred_check
      _
    $region19: #{policy_value_forward.1} parent=1 // pred_check_branch
      %47 = sbr.rel (0) target = $region21
    $region20: #{policy_value_forward.1} parent=1 // pred_region
      _
    $region21: #{policy_value_forward.1} parent=1 // pred_fallthru
      _
    // Predicated region
    $region22: #{policy_value_forward.1} parent=1 // pred_check
      _
    $region23: #{policy_value_forward.1} parent=1 // pred_check_branch
      %49 = sbr.rel (0) target = $region25
    $region24: #{policy_value_forward.1} parent=1 // pred_region
      %51 = vsyncadd [#allocation5], 0
      %s52 = sshll.u32 %s5, 4
      %s53 = int_to_ptr.hbm [resolvable:$true] %s52
      %s54 = sshll.u32 [#allocation6], 4
      %s55 = int_to_ptr.vmem [resolvable:$true] %s54
      %60 = dma.hbm_to_vmem [thread:$0]  %s53, 2048, %s55, [#allocation5], 128, 128, 8
    $region25: #{policy_value_forward.1} parent=1 // pred_fallthru
      _
    // Predicated region
    $region26: #{policy_value_forward.1} parent=1 // pred_check
      _
    $region27: #{policy_value_forward.1} parent=1 // pred_check_branch
      %62 = sbr.rel (0) target = $region29
    $region28: #{policy_value_forward.1} parent=1 // pred_region
      _
    $region29: #{policy_value_forward.1} parent=1 // pred_fallthru
      _
    // Predicated region
    $region30: #{policy_value_forward.1} parent=1 // pred_check
      _
    $region31: #{policy_value_forward.1} parent=1 // pred_check_branch
      %64 = sbr.rel (0) target = $region33
    $region32: #{policy_value_forward.1} parent=1 // pred_region
      %66 = dma.done [#allocation3], 256
    $region33: #{policy_value_forward.1} parent=1 // pred_fallthru
      _
    // Predicated region
    $region34: #{policy_value_forward.1} parent=1 // pred_check
      _
    $region35: #{policy_value_forward.1} parent=1 // pred_check_branch
      %68 = sbr.rel (0) target = $region37
    $region36: #{policy_value_forward.1} parent=1 // pred_region
      %70 = dma.done [#allocation5], 2048
    $region37: #{policy_value_forward.1} parent=1 // pred_fallthru
      _
    // Predicated region
    $region38: #{policy_value_forward.1} parent=1 // pred_check
      _
    $region39: #{policy_value_forward.1} parent=1 // pred_check_branch
      %72 = sbr.rel (0) target = $region41
    $region40: #{policy_value_forward.1} parent=1 // pred_region
      %74 = dma.done [#allocation5], 2048
    $region41: #{policy_value_forward.1} parent=1 // pred_fallthru
      _
    %v75 = vld [vmem:[%s0] sm:$0xff]
    %v76 = vld [vmem:[#allocation2] sm:$0xff]
    %v77 = vld [vmem:[#allocation2 + $0x8] sm:$0x1]
    %v78 = vld [vmem:[%s2] sm:$0x1]
    %v80 = vperm.slane %v78, 0
    %vm82 = vcmask 72704
    %v84 = vsel %vm82, %v75, 0
    %vm86 = vcmask 1040384
    %v88 = vsel %vm86, %v77, 0
    %90 = vmatpush.msra.mxu0 0.0
    %91 = vmatpush.msra.mxu0 0.0
    %92 = vmatpush.msra.mxu0 0.0
    %93 = vmatpush.msra.mxu0 0.0
    %94 = vmatpush.msra.mxu0 0.0
    %95 = vmatpush.msra.mxu0 0.0
    %96 = vmatpush.msra.mxu0 0.0
    %97 = vmatpush.msra.mxu0 0.0
    %98 = vmatpush.msra.mxu0 0.0
    %99 = vmatpush.msra.mxu0 0.0
    %100 = vmatpush.msra.mxu0 0.0
    %101 = vmatpush.msra.mxu0 0.0
    %102 = vmatpush.msra.mxu0 0.0
    %103 = vmatpush.msra.mxu0 0.0
    %104 = vmatpush.msra.mxu0 %v88
    %105 = vmatpush.msra.mxu0 %v76
    %106 = vmatmul.f32.gmra.mxu0 %v84
    %v107 = vpop.f32.mrf.mxu0
    %v108 = vadd.f32 %v80, %v107
    %109 = vdwg.mxu0
    %vm110 = vcmp.gt.f32.partialorder %v108, 0.0
    %v111 = vmin.f32 %v108, 0.0
    %v112 = vmul.f32 %v111, 1.442695
    %v113 = vpow.pop %v112
    %v114 = vsub.f32 %v113, 1.0
    %v115 = vmul.f32 %v114, 1.6732632
    %v116 = vsel %vm110, %v108, %v115
    %v117 = vmul.f32 %v116, 1.050701
    %v118 = vld [vmem:[#allocation4] sm:$0xff]
    %v119 = vld [vmem:[#allocation4 + $0x8] sm:$0xff]
    %v120 = vld [vmem:[#allocation4 + $0x10] sm:$0xff]
    %v121 = vld [vmem:[#allocation4 + $0x18] sm:$0xff]
    %v122 = vld [vmem:[#allocation4 + $0x20] sm:$0xff]
    %v123 = vld [vmem:[#allocation4 + $0x28] sm:$0xff]
    %v124 = vld [vmem:[#allocation4 + $0x30] sm:$0xff]
    %v125 = vld [vmem:[#allocation4 + $0x38] sm:$0xff]
    %v126 = vld [vmem:[#allocation4 + $0x40] sm:$0xff]
    %v127 = vld [vmem:[#allocation4 + $0x48] sm:$0xff]
    %v128 = vld [vmem:[#allocation4 + $0x50] sm:$0xff]
    %v129 = vld [vmem:[#allocation4 + $0x58] sm:$0xff]
    %v130 = vld [vmem:[#allocation4 + $0x60] sm:$0xff]
    %v131 = vld [vmem:[#allocation4 + $0x68] sm:$0xff]
    %v132 = vld [vmem:[#allocation4 + $0x70] sm:$0xff]
    %v133 = vld [vmem:[#allocation4 + $0x78] sm:$0xff]
    %v134 = vld [vmem:[%s4] sm:$0x1]
    %v136 = vperm.slane %v134, 0
    %138 = vmatpush.msra.mxu0 %v133
    %139 = vmatpush.msra.mxu0 %v132
    %140 = vmatpush.msra.mxu0 %v131
    %141 = vmatpush.msra.mxu0 %v130
    %142 = vmatpush.msra.mxu0 %v129
    %143 = vmatpush.msra.mxu0 %v128
    %144 = vmatpush.msra.mxu0 %v127
    %145 = vmatpush.msra.mxu0 %v126
    %146 = vmatpush.msra.mxu0 %v125
    %147 = vmatpush.msra.mxu0 %v124
    %148 = vmatpush.msra.mxu0 %v123
    %149 = vmatpush.msra.mxu0 %v122
    %150 = vmatpush.msra.mxu0 %v121
    %151 = vmatpush.msra.mxu0 %v120
    %152 = vmatpush.msra.mxu0 %v119
    %153 = vmatpush.msra.mxu0 %v118
    %154 = vmatmul.f32.gmra.mxu0 %v117
    %v155 = vpop.f32.mrf.mxu0
    %v156 = vadd.f32 %v136, %v155
    %157 = vdwg.mxu0
    %vm158 = vcmp.gt.f32.partialorder %v156, 0.0
    %v159 = vmin.f32 %v156, 0.0
    %v160 = vmul.f32 %v159, 1.442695
    %v161 = vpow.pop %v160
    %v162 = vsub.f32 %v161, 1.0
    %v163 = vmul.f32 %v162, 1.6732632
    %v164 = vsel %vm158, %v156, %v163
    %v165 = vmul.f32 %v164, 1.050701
    %v166 = vld [vmem:[#allocation6] sm:$0xff]
    %v167 = vld [vmem:[#allocation6 + $0x8] sm:$0xff]
    %v168 = vld [vmem:[#allocation6 + $0x10] sm:$0xff]
    %v169 = vld [vmem:[#allocation6 + $0x18] sm:$0xff]
    %v170 = vld [vmem:[#allocation6 + $0x20] sm:$0xff]
    %v171 = vld [vmem:[#allocation6 + $0x28] sm:$0xff]
    %v172 = vld [vmem:[#allocation6 + $0x30] sm:$0xff]
    %v173 = vld [vmem:[#allocation6 + $0x38] sm:$0xff]
    %v174 = vld [vmem:[#allocation6 + $0x40] sm:$0xff]
    %v175 = vld [vmem:[#allocation6 + $0x48] sm:$0xff]
    %v176 = vld [vmem:[#allocation6 + $0x50] sm:$0xff]
    %v177 = vld [vmem:[#allocation6 + $0x58] sm:$0xff]
    %v178 = vld [vmem:[#allocation6 + $0x60] sm:$0xff]
    %v179 = vld [vmem:[#allocation6 + $0x68] sm:$0xff]
    %v180 = vld [vmem:[#allocation6 + $0x70] sm:$0xff]
    %v181 = vld [vmem:[#allocation6 + $0x78] sm:$0xff]
    %v182 = vld [vmem:[%s6] sm:$0x1]
    %v184 = vperm.slane %v182, 0
    %186 = vmatpush.msra.mxu0 %v181
    %187 = vmatpush.msra.mxu0 %v180
    %188 = vmatpush.msra.mxu0 %v179
    %189 = vmatpush.msra.mxu0 %v178
    %190 = vmatpush.msra.mxu0 %v177
    %191 = vmatpush.msra.mxu0 %v176
    %192 = vmatpush.msra.mxu0 %v175
    %193 = vmatpush.msra.mxu0 %v174
    %194 = vmatpush.msra.mxu0 %v173
    %195 = vmatpush.msra.mxu0 %v172
    %196 = vmatpush.msra.mxu0 %v171
    %197 = vmatpush.msra.mxu0 %v170
    %198 = vmatpush.msra.mxu0 %v169
    %199 = vmatpush.msra.mxu0 %v168
    %200 = vmatpush.msra.mxu0 %v167
    %201 = vmatpush.msra.mxu0 %v166
    %202 = vmatmul.f32.gmra.mxu0 %v165
    %v203 = vpop.f32.mrf.mxu0
    %v204 = vadd.f32 %v184, %v203
    %205 = vdwg.mxu0
    %206 = vst.msk [vmem:[%s7] sm:$0xff] %vm82, %v204
    %v207 = vtanh.pop %v204
    %209 = vrot.lane.b32.xlu0 %v207, 119
    %v210 = vpop.permute.xlu0 %209
    %vm212 = vcmask 7168
    %213 = vst.msk [vmem:[%s8] sm:$0xff] %vm212, %v210
    // Predicated region
    $region42: #{policy_value_forward.1} parent=1 // pred_check
      _
    $region43: #{policy_value_forward.1} parent=1 // pred_check_branch
      %215 = sbr.rel (0) target = $region45
    $region44: #{policy_value_forward.1} parent=1 // pred_region
      _
    $region45: #{policy_value_forward.1} parent=1 // pred_fallthru
      _
    // Predicated region
    $region46: #{policy_value_forward.1} parent=1 // pred_check
      _
    $region47: #{policy_value_forward.1} parent=1 // pred_check_branch
      %217 = sbr.rel (0) target = $region49
    $region48: #{policy_value_forward.1} parent=1 // pred_region
      _
    $region49: #{policy_value_forward.1} parent=1 // pred_fallthru
      _
    // Predicated region
    $region50: #{policy_value_forward.1} parent=1 // pred_check
      _
    $region51: #{policy_value_forward.1} parent=1 // pred_check_branch
      %219 = sbr.rel (0) target = $region53
    $region52: #{policy_value_forward.1} parent=1 // pred_region
      _
    $region53: #{policy_value_forward.1} parent=1 // pred_fallthru
      _
    // Predicated region
    $region54: #{policy_value_forward.1} parent=1 // pred_check
      _
    $region55: #{policy_value_forward.1} parent=1 // pred_check_branch
      %221 = sbr.rel (0) target = $region57
    $region56: #{policy_value_forward.1} parent=1 // pred_region
      _
    $region57: #{policy_value_forward.1} parent=1 // pred_fallthru
      _
    %222 = vsyncpa [#allocation3], 1
    %223 = vsyncpa [#allocation5], 1

</llo_original>
